<compile_context>
chip_gen: v6e
topology: v6e:2x2x1
jax: 0.10.0
libtpu: 0.0.40
codegen_flags: <defaults>
</compile_context>

<pallas_src>
import jax
import jax.numpy as jnp
from jax.experimental import pallas as pl
from jax.experimental.pallas import tpu as pltpu


def _cdiv(a, b):
    return (a + b - 1) // b


def _round_up(a, b):
    return _cdiv(a, b) * b


def _mlp_param_kernel(x_ref, q_ref, w_ref, b_ref, o_ref):
    # x_ref : (TN, I)     bf16 tile of inputs
    # q_ref : (TN, D)     bf16 tile of query vectors
    # w_ref : (D*I, O)    bf16 stacked weights (VMEM-resident, constant map)
    # b_ref : (D, O)      f32 bias (VMEM-resident, constant map)
    # o_ref : (TN, O)     f32 output tile
    x = x_ref[...]                               # (TN, I)
    q = q_ref[...]                               # (TN, D)
    b = b_ref[...]                               # (D, O)
    d_dim = q_ref.shape[-1]

    # Bias contribution on the VPU: D broadcast-FMAs in f32 (free slots).
    q_f32 = q.astype(jnp.float32)
    acc = jnp.zeros(o_ref.shape, jnp.float32)
    for d in range(d_dim):
        acc = acc + q_f32[:, d:d + 1] * b[d, :]

    # Weight contribution: one stacked-K MXU matmul.
    #   z[:, d*I + i] = x[:, i] * q[:, d]   (lane concat of D slabs)
    z = jnp.concatenate([x * q[:, d:d + 1] for d in range(d_dim)], axis=-1)
    acc = acc + jnp.dot(z, w_ref[...], preferred_element_type=jnp.float32)

    o_ref[...] = acc.astype(o_ref.dtype)


def _choose_tile_n(n, max_tile_n, min_grid_steps):
    """Pick a row-tile size (multiple of 8, <= max_tile_n) that minimizes
    padding waste while giving at least `min_grid_steps` grid steps when
    there is enough work (so v7x's two TensorCores both get a share)."""
    assert max_tile_n % 8 == 0 and max_tile_n >= 8
    if n <= 8:
        return 8
    steps = max(min_grid_steps, _cdiv(n, max_tile_n))
    tile = _round_up(_cdiv(n, steps), 8)
    return max(8, min(tile, max_tile_n))


def mlp_param(x, query_vectors, w_1, b_1, *, max_tile_n=1024,
              min_grid_steps=2, compute_dtype=jnp.bfloat16):
    """x: (n, input_size), query_vectors: (n, query_vector_dim),
    w_1: (query_vector_dim, input_size, output_size),
    b_1: (query_vector_dim, output_size).  Returns f32 (n, output_size)."""
    n, i = x.shape
    d, i2, o = w_1.shape
    assert i2 == i
    assert query_vectors.shape == (n, d)
    assert b_1.shape == (d, o)

    tile_n = _choose_tile_n(n, max_tile_n, min_grid_steps)
    n_pad = _round_up(n, tile_n)

    # Streamed operands in bf16 (halved HBM bytes, MXU-native on v6e/v7x).
    x_c = x.astype(compute_dtype)
    q_c = query_vectors.astype(compute_dtype)
    if n_pad != n:
        # Only the ragged tail rows are padded (zeros -> contribute nothing).
        x_c = jnp.pad(x_c, ((0, n_pad - n), (0, 0)))
        q_c = jnp.pad(q_c, ((0, n_pad - n), (0, 0)))

    # Stack the D contraction into one K = D*I matmul operand.
    w_s = w_1.reshape(d * i, o).astype(compute_dtype)
    b_f = b_1.astype(jnp.float32)

    grid = (n_pad // tile_n,)
    out = pl.pallas_call(
        _mlp_param_kernel,
        out_shape=jax.ShapeDtypeStruct((n_pad, o), jnp.float32),
        grid_spec=pltpu.PrefetchScalarGridSpec(
            num_scalar_prefetch=0,
            grid=grid,
            in_specs=[
                pl.BlockSpec((tile_n, i), lambda t: (t, 0)),
                pl.BlockSpec((tile_n, d), lambda t: (t, 0)),
                # Constant index_maps -> parameters stay VMEM-resident.
                pl.BlockSpec((d * i, o), lambda t: (0, 0)),
                pl.BlockSpec((d, o), lambda t: (0, 0)),
            ],
            out_specs=pl.BlockSpec((tile_n, o), lambda t: (t, 0)),
        ),
        compiler_params=pltpu.CompilerParams(
            dimension_semantics=("parallel",)),
    )(x_c, q_c, w_s, b_f)

    if n_pad != n:
        out = out[:n]
    return out


def _reference(x, query_vectors, w_1, b_1):
    w_eff = jnp.einsum('nd,dio->nio', query_vectors, w_1)
    b_eff = jnp.einsum('nd,do->no', query_vectors, b_1)
    return jnp.einsum('ni,nio->no', x, w_eff) + b_eff


if __name__ == "__main__":
    key = jax.random.PRNGKey(0)
    kx, kq, kw, kb, kx2, kq2 = jax.random.split(key, 6)

    input_size = 32
    output_size = 32
    query_vector_dim = 4

    w_1 = 0.1 * jax.random.normal(
        kw, (query_vector_dim, input_size, output_size), jnp.float32)
    b_1 = 0.1 * jax.random.normal(
        kb, (query_vector_dim, output_size), jnp.float32)

    # bf16 streamed operands -> loose tolerance vs the f32 reference.
    ATOL = 3e-2
    RTOL = 3e-2

    # Case 1: tiny batch, single grid step.
    n1 = 8
    x1 = jax.random.normal(kx, (n1, input_size), jnp.float32)
    q1 = jax.random.normal(kq, (n1, query_vector_dim), jnp.float32)
    out1 = mlp_param(x1, q1, w_1, b_1)
    jax.block_until_ready(out1)
    ref1 = _reference(x1, q1, w_1, b_1)
    assert out1.shape == (n1, output_size)
    assert jnp.allclose(out1, ref1, atol=ATOL, rtol=RTOL)

    # Case 2: ragged batch, >=2 grid steps (exercises tiling + small padding).
    n2 = 120
    x2 = jax.random.normal(kx2, (n2, input_size), jnp.float32)
    q2 = jax.random.normal(kq2, (n2, query_vector_dim), jnp.float32)
    out2 = mlp_param(x2, q2, w_1, b_1)
    jax.block_until_ready(out2)
    ref2 = _reference(x2, q2, w_1, b_1)
    assert out2.shape == (n2, output_size)
    assert jnp.allclose(out2, ref2, atol=ATOL, rtol=RTOL)

    # Case 3: small tile cap -> several grid steps.
    out3 = mlp_param(x2, q2, w_1, b_1, max_tile_n=32)
    jax.block_until_ready(out3)
    assert jnp.allclose(out3, ref2, atol=ATOL, rtol=RTOL)

    print("KERNEL_OK")
</pallas_src>

<mosaic_0001>
module attributes {stable_mosaic.version = 11 : i64} {
  func.func @_mlp_param_kernel(%arg0: i32, %arg1: memref<8x32xbf16, #tpu.memory_space<vmem>>, %arg2: memref<8x4xbf16, #tpu.memory_space<vmem>>, %arg3: memref<128x32xbf16, #tpu.memory_space<vmem>>, %arg4: memref<4x32xf32, #tpu.memory_space<vmem>>, %arg5: memref<8x32xf32, #tpu.memory_space<vmem>>) attributes {dimension_semantics = [#tpu.dimension_semantics<parallel>], iteration_bounds = array<i64: 1>, scalar_prefetch = 0 : i64, scratch_operands = 0 : i64, tpu.core_type = #tpu.core_type<tc>, window_params = [{transform_indices = @transform_0, window_bounds = array<i64: 8, 32>}, {transform_indices = @transform_1, window_bounds = array<i64: 8, 4>}, {pipeline_mode = #tpu.pipeline_mode<synchronous>, transform_indices = @transform_2, window_bounds = array<i64: 128, 32>}, {pipeline_mode = #tpu.pipeline_mode<synchronous>, transform_indices = @transform_3, window_bounds = array<i64: 4, 32>}, {transform_indices = @transform_4, window_bounds = array<i64: 8, 32>}]} {
    %c0 = arith.constant 0 : index
    %c0_0 = arith.constant 0 : index
    %0 = vector.load %arg1[%c0, %c0_0] : memref<8x32xbf16, #tpu.memory_space<vmem>>, vector<8x32xbf16>
    %c0_1 = arith.constant 0 : index
    %c0_2 = arith.constant 0 : index
    %1 = vector.load %arg2[%c0_1, %c0_2] : memref<8x4xbf16, #tpu.memory_space<vmem>>, vector<8x4xbf16>
    %c0_3 = arith.constant 0 : index
    %c0_4 = arith.constant 0 : index
    %2 = vector.load %arg4[%c0_3, %c0_4] : memref<4x32xf32, #tpu.memory_space<vmem>>, vector<4x32xf32>
    %3 = arith.extf %1 : vector<8x4xbf16> to vector<8x4xf32>
    %cst = arith.constant 0.000000e+00 : f32
    %4 = vector.broadcast %cst : f32 to vector<8x32xf32>
    %5 = vector.extract_strided_slice %3 {offsets = [0, 0], sizes = [8, 1], strides = [1, 1]} : vector<8x4xf32> to vector<8x1xf32>
    %6 = vector.extract_strided_slice %2 {offsets = [0, 0], sizes = [1, 32], strides = [1, 1]} : vector<4x32xf32> to vector<1x32xf32>
    %7 = vector.shape_cast %6 : vector<1x32xf32> to vector<32xf32>
    %8 = vector.shape_cast %7 : vector<32xf32> to vector<1x32xf32>
    %9 = vector.broadcast %5 : vector<8x1xf32> to vector<8x32xf32>
    %10 = vector.broadcast %8 : vector<1x32xf32> to vector<8x32xf32>
    %11 = arith.mulf %9, %10 : vector<8x32xf32>
    %12 = arith.addf %4, %11 : vector<8x32xf32>
    %13 = vector.extract_strided_slice %3 {offsets = [0, 1], sizes = [8, 1], strides = [1, 1]} : vector<8x4xf32> to vector<8x1xf32>
    %14 = vector.extract_strided_slice %2 {offsets = [1, 0], sizes = [1, 32], strides = [1, 1]} : vector<4x32xf32> to vector<1x32xf32>
    %15 = vector.shape_cast %14 : vector<1x32xf32> to vector<32xf32>
    %16 = vector.shape_cast %15 : vector<32xf32> to vector<1x32xf32>
    %17 = vector.broadcast %13 : vector<8x1xf32> to vector<8x32xf32>
    %18 = vector.broadcast %16 : vector<1x32xf32> to vector<8x32xf32>
    %19 = arith.mulf %17, %18 : vector<8x32xf32>
    %20 = arith.addf %12, %19 : vector<8x32xf32>
    %21 = vector.extract_strided_slice %3 {offsets = [0, 2], sizes = [8, 1], strides = [1, 1]} : vector<8x4xf32> to vector<8x1xf32>
    %22 = vector.extract_strided_slice %2 {offsets = [2, 0], sizes = [1, 32], strides = [1, 1]} : vector<4x32xf32> to vector<1x32xf32>
    %23 = vector.shape_cast %22 : vector<1x32xf32> to vector<32xf32>
    %24 = vector.shape_cast %23 : vector<32xf32> to vector<1x32xf32>
    %25 = vector.broadcast %21 : vector<8x1xf32> to vector<8x32xf32>
    %26 = vector.broadcast %24 : vector<1x32xf32> to vector<8x32xf32>
    %27 = arith.mulf %25, %26 : vector<8x32xf32>
    %28 = arith.addf %20, %27 : vector<8x32xf32>
    %29 = vector.extract_strided_slice %3 {offsets = [0, 3], sizes = [8, 1], strides = [1, 1]} : vector<8x4xf32> to vector<8x1xf32>
    %30 = vector.extract_strided_slice %2 {offsets = [3, 0], sizes = [1, 32], strides = [1, 1]} : vector<4x32xf32> to vector<1x32xf32>
    %31 = vector.shape_cast %30 : vector<1x32xf32> to vector<32xf32>
    %32 = vector.shape_cast %31 : vector<32xf32> to vector<1x32xf32>
    %33 = vector.broadcast %29 : vector<8x1xf32> to vector<8x32xf32>
    %34 = vector.broadcast %32 : vector<1x32xf32> to vector<8x32xf32>
    %35 = arith.mulf %33, %34 : vector<8x32xf32>
    %36 = arith.addf %28, %35 : vector<8x32xf32>
    %37 = vector.extract_strided_slice %1 {offsets = [0, 0], sizes = [8, 1], strides = [1, 1]} : vector<8x4xbf16> to vector<8x1xbf16>
    %38 = vector.broadcast %37 : vector<8x1xbf16> to vector<8x32xbf16>
    %39 = arith.mulf %0, %38 : vector<8x32xbf16>
    %40 = vector.extract_strided_slice %1 {offsets = [0, 1], sizes = [8, 1], strides = [1, 1]} : vector<8x4xbf16> to vector<8x1xbf16>
    %41 = vector.broadcast %40 : vector<8x1xbf16> to vector<8x32xbf16>
    %42 = arith.mulf %0, %41 : vector<8x32xbf16>
    %43 = vector.extract_strided_slice %1 {offsets = [0, 2], sizes = [8, 1], strides = [1, 1]} : vector<8x4xbf16> to vector<8x1xbf16>
    %44 = vector.broadcast %43 : vector<8x1xbf16> to vector<8x32xbf16>
    %45 = arith.mulf %0, %44 : vector<8x32xbf16>
    %46 = vector.extract_strided_slice %1 {offsets = [0, 3], sizes = [8, 1], strides = [1, 1]} : vector<8x4xbf16> to vector<8x1xbf16>
    %47 = vector.broadcast %46 : vector<8x1xbf16> to vector<8x32xbf16>
    %48 = arith.mulf %0, %47 : vector<8x32xbf16>
    %49 = tpu.concatenate %39, %42, %45, %48 in 1 : vector<8x32xbf16>, vector<8x32xbf16>, vector<8x32xbf16>, vector<8x32xbf16> -> vector<8x128xbf16>
    %c0_5 = arith.constant 0 : index
    %c0_6 = arith.constant 0 : index
    %50 = vector.load %arg3[%c0_5, %c0_6] : memref<128x32xbf16, #tpu.memory_space<vmem>>, vector<128x32xbf16>
    %cst_7 = arith.constant dense<0.000000e+00> : vector<8x32xf32>
    %51 = tpu.matmul %49, %50, %cst_7 {dimension_numbers = #tpu.dot_dimension_numbers<[1], [0], [0], [1], [0, 0, 1, 1], [], []>} : vector<8x128xbf16>, vector<128x32xbf16>, vector<8x32xf32> -> vector<8x32xf32>
    %52 = arith.addf %36, %51 : vector<8x32xf32>
    %c0_8 = arith.constant 0 : index
    %c0_9 = arith.constant 0 : index
    %53 = vector.load %arg5[%c0_8, %c0_9] : memref<8x32xf32, #tpu.memory_space<vmem>>, vector<8x32xf32>
    tpu.vector_store %arg5[%c0_8, %c0_9], %52 {strides = array<i32>} : memref<8x32xf32, #tpu.memory_space<vmem>>, vector<8x32xf32>,
    return
  }
  func.func @transform_0(%arg0: i32) -> (i32, i32) {
    %c0_i32 = arith.constant 0 : i32
    %c0_i32_0 = arith.constant 0 : i32
    return %arg0, %c0_i32 : i32, i32
  }
  func.func @transform_1(%arg0: i32) -> (i32, i32) {
    %c0_i32 = arith.constant 0 : i32
    %c0_i32_0 = arith.constant 0 : i32
    return %arg0, %c0_i32 : i32, i32
  }
  func.func @transform_2(%arg0: i32) -> (i32, i32) {
    %c0_i32 = arith.constant 0 : i32
    %c0_i32_0 = arith.constant 0 : i32
    %c0_i32_1 = arith.constant 0 : i32
    return %c0_i32, %c0_i32_0 : i32, i32
  }
  func.func @transform_3(%arg0: i32) -> (i32, i32) {
    %c0_i32 = arith.constant 0 : i32
    %c0_i32_0 = arith.constant 0 : i32
    %c0_i32_1 = arith.constant 0 : i32
    return %c0_i32, %c0_i32_0 : i32, i32
  }
  func.func @transform_4(%arg0: i32) -> (i32, i32) {
    %c0_i32 = arith.constant 0 : i32
    %c0_i32_0 = arith.constant 0 : i32
    return %arg0, %c0_i32 : i32, i32
  }
}

</mosaic_0001>

<llo_original>
// kernel: tpu_custom_call.1
$region0: #{tpu_custom_call.1}
  #allocation0 [shape = 'u32[]', space=smem, size = 0x4, offset = 0x4, fixed_abs, tag = 'smem constant byte address 0x4 - core index']
  #allocation1 [shape = 'u32[144,128]{1,0:T(1,128)}', space=vmem, size = 0x12000, scoped, tag = 'internal scratch']
  %s0 = inlined_call_operand.vmem [shape: bf16[8,32], index: 0, kind: input, shape index: {}]
  %s1 = inlined_call_operand.vmem [shape: bf16[8,4], index: 1, kind: input, shape index: {}]
  %s2 = inlined_call_operand.vmem [shape: bf16[128,32], index: 2, kind: input, shape index: {}]
  %s3 = inlined_call_operand.vmem [shape: f32[4,32], index: 3, kind: input, shape index: {}]
  %s4 = inlined_call_operand.hbm [shape: f32[8,32], index: 4, kind: output, shape index: {}]
  %s5 = sld [smem:[#allocation0]]
  $region26: #{tpu_custom_call.1} parent=0
    _
  %s7 = ssub.s32 1, %s5
  %s8 = scalar_select 0, %s7, %s5
  $region1: #{tpu_custom_call.1} parent=0
    #allocation2 [shape = 'u8[4096]{0}', space=vmem, size = 0x1000, scoped, tag = 'output window, operand 0, single buffered']
    #allocation3 [shape = 's32[1]{0}', space=sflag, size = 0x4, scoped, tag = 'scoped memory for tpu_custom_call.1']
    %9 = vsyncpa [#allocation3], 0
    // Predicated region
    $region2: #{tpu_custom_call.1} parent=1 // pred_check
      _
    $region3: #{tpu_custom_call.1} parent=1 // pred_check_branch
      %11 = sbr.rel (0) target = $region5
    $region4: #{tpu_custom_call.1} parent=1 // pred_region
      _
    $region5: #{tpu_custom_call.1} parent=1 // pred_fallthru
      _
    // Predicated region
    $region6: #{tpu_custom_call.1} parent=1 // pred_check
      _
    $region7: #{tpu_custom_call.1} parent=1 // pred_check_branch
      %13 = sbr.rel (0) target = $region9
    $region8: #{tpu_custom_call.1} parent=1 // pred_region
      _
    $region9: #{tpu_custom_call.1} parent=1 // pred_fallthru
      _
    // Predicated region
    $region10: #{tpu_custom_call.1} parent=1 // pred_check
      _
    $region11: #{tpu_custom_call.1} parent=1 // pred_check_branch
      %15 = sbr.rel (0) target = $region13
    $region12: #{tpu_custom_call.1} parent=1 // pred_region
      _
    $region13: #{tpu_custom_call.1} parent=1 // pred_fallthru
      _
    // Predicated region
    $region14: #{tpu_custom_call.1} parent=1 // pred_check
      _
    $region15: #{tpu_custom_call.1} parent=1 // pred_check_branch
      %17 = sbr.rel (0) target = $region17
    $region16: #{tpu_custom_call.1} parent=1 // pred_region
      _
    $region17: #{tpu_custom_call.1} parent=1 // pred_fallthru
      _
    %v19 = vld [vmem:[%s0] sm:$0xf]
    %v20 = vld [vmem:[%s1] sm:$0xf]
    %v21 = vld [vmem:[%s3] sm:$0xf]
    %v22 = vunpack.c.l.bf16 %v20
    %24 = vset.pattern.permute.xlu0 0
    %25 = vperm.xlu0 %24, %v22
    %v26 = vpop.permute.xlu0 %25
    %v28 = vlaneseq
    %v29 = vshrl.u32 %v28, 7
    %v30 = vsub.s32 0, %v29
    %v31 = vrot.slane %v21, %v30
    %v32 = vmul.f32 %v26, %v31
    %v33 = vadd.f32 %v32, 0.0
    %34 = vset.pattern.permute.xlu0 1
    %35 = vperm.xlu0 %34, %v22
    %v36 = vpop.permute.xlu0 %35
    %v38 = vlaneseq
    %v39 = vshrl.u32 %v38, 7
    %v40 = vsub.s32 1, %v39
    %v41 = vrot.slane %v21, %v40
    %v42 = vmul.f32 %v36, %v41
    %v43 = vadd.f32 %v33, %v42
    %44 = vset.pattern.permute.xlu0 2
    %45 = vperm.xlu0 %44, %v22
    %v46 = vpop.permute.xlu0 %45
    %v48 = vlaneseq
    %v49 = vshrl.u32 %v48, 7
    %v50 = vsub.s32 2, %v49
    %v51 = vrot.slane %v21, %v50
    %v52 = vmul.f32 %v46, %v51
    %v53 = vadd.f32 %v43, %v52
    %54 = vset.pattern.permute.xlu0 3
    %55 = vperm.xlu0 %54, %v22
    %v56 = vpop.permute.xlu0 %55
    %v58 = vlaneseq
    %v59 = vshrl.u32 %v58, 7
    %v60 = vsub.s32 3, %v59
    %v61 = vrot.slane %v21, %v60
    %v62 = vmul.f32 %v56, %v61
    %v63 = vadd.f32 %v53, %v62
    %65 = vset.pattern.permute.xlu0 0
    %66 = vperm.xlu0 %65, %v20
    %v67 = vpop.permute.xlu0 %66
    %v70 = vunpack.c.l.s4 839922192
    %v71 = vunpack.c.0.s8 %v70
    %v72 = vlaneseq
    %v73 = vshrl.u32 %v72, 7
    %v74 = vsub.s32 %v71, %v73
    %v75 = vrot.slane %v67, %v74
    %v76 = vmul.bf16 %v19, %v75
    %77 = vset.pattern.permute.xlu0 1
    %78 = vperm.xlu0 %77, %v20
    %v79 = vpop.permute.xlu0 %78
    %v82 = vunpack.c.l.s4 839922192
    %v83 = vunpack.c.0.s8 %v82
    %v84 = vlaneseq
    %v85 = vshrl.u32 %v84, 7
    %v86 = vsub.s32 %v83, %v85
    %v87 = vrot.slane %v79, %v86
    %v88 = vmul.bf16 %v19, %v87
    %89 = vset.pattern.permute.xlu0 2
    %90 = vperm.xlu0 %89, %v20
    %v91 = vpop.permute.xlu0 %90
    %v94 = vunpack.c.l.s4 839922192
    %v95 = vunpack.c.0.s8 %v94
    %v96 = vlaneseq
    %v97 = vshrl.u32 %v96, 7
    %v98 = vsub.s32 %v95, %v97
    %v99 = vrot.slane %v91, %v98
    %v100 = vmul.bf16 %v19, %v99
    %101 = vset.pattern.permute.xlu0 3
    %102 = vperm.xlu0 %101, %v20
    %v103 = vpop.permute.xlu0 %102
    %v106 = vunpack.c.l.s4 839922192
    %v107 = vunpack.c.0.s8 %v106
    %v108 = vlaneseq
    %v109 = vshrl.u32 %v108, 7
    %v110 = vsub.s32 %v107, %v109
    %v111 = vrot.slane %v103, %v110
    %v112 = vmul.bf16 %v19, %v111
    %v114 = vunpack.c.l.b16 %v88
    %v115 = vpack.c.b16 %v114, %v114
    %116 = vrot.lane.b32.xlu0 %v115, 32
    %v117 = vpop.permute.xlu0 %116
    %v119 = vunpack.c.l.b16 %v100
    %v120 = vpack.c.b16 %v119, %v119
    %121 = vrot.lane.b32.xlu0 %v120, 64
    %v122 = vpop.permute.xlu0 %121
    %v124 = vunpack.c.l.b16 %v112
    %v125 = vpack.c.b16 %v124, %v124
    %126 = vrot.lane.b32.xlu0 %v125, 96
    %v127 = vpop.permute.xlu0 %126
    %vm128 = vcmask 261120
    %v131 = vsel %vm128, %v76, %v117
    %vm132 = vcmask 523264
    %v134 = vsel %vm132, %v131, %v122
    %vm135 = vcmask 785408
    %v137 = vsel %vm135, %v134, %v127
    %v139 = vld [vmem:[%s2] sm:$0xf]
    %v140 = vld [vmem:[%s2 + $0x4] sm:$0xf]
    %v141 = vld [vmem:[%s2 + $0x8] sm:$0xf]
    %v142 = vld [vmem:[%s2 + $0xc] sm:$0xf]
    %v143 = vld [vmem:[%s2 + $0x10] sm:$0xf]
    %v144 = vld [vmem:[%s2 + $0x14] sm:$0xf]
    %v145 = vld [vmem:[%s2 + $0x18] sm:$0xf]
    %v146 = vld [vmem:[%s2 + $0x1c] sm:$0xf]
    %v147 = vld [vmem:[%s2 + $0x20] sm:$0xf]
    %v148 = vld [vmem:[%s2 + $0x24] sm:$0xf]
    %v149 = vld [vmem:[%s2 + $0x28] sm:$0xf]
    %v150 = vld [vmem:[%s2 + $0x2c] sm:$0xf]
    %v151 = vld [vmem:[%s2 + $0x30] sm:$0xf]
    %v152 = vld [vmem:[%s2 + $0x34] sm:$0xf]
    %v153 = vld [vmem:[%s2 + $0x38] sm:$0xf]
    %v154 = vld [vmem:[%s2 + $0x3c] sm:$0xf]
    %v171 = vunpack.c.l.b16 %v139
    %v172 = vunpack.c.l.b16 %v140
    %v173 = vunpack.c.l.b16 %v141
    %v174 = vunpack.c.l.b16 %v142
    %v175 = vunpack.c.l.b16 %v143
    %v176 = vunpack.c.l.b16 %v144
    %v177 = vunpack.c.l.b16 %v145
    %v178 = vunpack.c.l.b16 %v146
    %v179 = vunpack.c.l.b16 %v147
    %v180 = vunpack.c.l.b16 %v148
    %v181 = vunpack.c.l.b16 %v149
    %v182 = vunpack.c.l.b16 %v150
    %v183 = vunpack.c.l.b16 %v151
    %v184 = vunpack.c.l.b16 %v152
    %v185 = vunpack.c.l.b16 %v153
    %v186 = vunpack.c.l.b16 %v154
    %v187 = vpack.c.b16 %v172, %v171
    %v188 = vpack.c.b16 %v174, %v173
    %v189 = vpack.c.b16 %v176, %v175
    %v190 = vpack.c.b16 %v178, %v177
    %v191 = vpack.c.b16 %v180, %v179
    %v192 = vpack.c.b16 %v182, %v181
    %v193 = vpack.c.b16 %v184, %v183
    %v194 = vpack.c.b16 %v186, %v185
    %203 = vmatprep.subr.bf16.mxu0 0
    %204 = vmatpush1.bf16.msra.mxu0 %v194
    %205 = vmatprep.subr.bf16.mxu0 0
    %206 = vmatpush1.bf16.msra.mxu0 %v193
    %207 = vmatprep.subr.bf16.mxu0 0
    %208 = vmatpush1.bf16.msra.mxu0 %v192
    %209 = vmatprep.subr.bf16.mxu0 0
    %210 = vmatpush1.bf16.msra.mxu0 %v191
    %211 = vmatprep.subr.bf16.mxu0 0
    %212 = vmatpush1.bf16.msra.mxu0 %v190
    %213 = vmatprep.subr.bf16.mxu0 0
    %214 = vmatpush1.bf16.msra.mxu0 %v189
    %215 = vmatprep.subr.bf16.mxu0 0
    %216 = vmatpush1.bf16.msra.mxu0 %v188
    %217 = vmatprep.subr.bf16.mxu0 0
    %218 = vmatpush1.bf16.msra.mxu0 %v187
    %219 = vmatprep.subr.bf16.mxu0 0
    %220 = vmatpush2.bf16.msra.mxu0 0
    %221 = vmatprep.subr.bf16.mxu0 0
    %222 = vmatpush2.bf16.msra.mxu0 0
    %223 = vmatprep.subr.bf16.mxu0 0
    %224 = vmatpush2.bf16.msra.mxu0 0
    %225 = vmatprep.subr.bf16.mxu0 0
    %226 = vmatpush2.bf16.msra.mxu0 0
    %227 = vmatprep.subr.bf16.mxu0 0
    %228 = vmatpush2.bf16.msra.mxu0 0
    %229 = vmatprep.subr.bf16.mxu0 0
    %230 = vmatpush2.bf16.msra.mxu0 0
    %231 = vmatprep.subr.bf16.mxu0 0
    %232 = vmatpush2.bf16.msra.mxu0 0
    %233 = vmatprep.subr.bf16.mxu0 0
    %234 = vmatpush2.bf16.msra.mxu0 0
    %235 = vmatprep.mubr.bf16.mxu0 0
    %236 = vmatmul.mubr.bf16.gmra.mxu0 %v137
    %v237 = vpop.f32.mrf.mxu0
    %v238 = vadd.f32 0.0, %v237
    %v239 = vpop.f32.mrf.mxu0
    %v240 = vpop.f32.mrf.mxu0
    %v241 = vpop.f32.mrf.mxu0
    %242 = vdwg.mxu0
    %v243 = vadd.f32 %v63, %v238
    %244 = vst.msk [vmem:[#allocation2] sm:$0xff] %vm128, %v243
    // Predicated region
    $region18: #{tpu_custom_call.1} parent=1 // pred_check
      _
    $region19: #{tpu_custom_call.1} parent=1 // pred_check_branch
      %246 = sbr.rel (0) target = $region21
    $region20: #{tpu_custom_call.1} parent=1 // pred_region
      %s248 = ssub.s32 128, 128
      %249 = vsyncadd [#allocation3], %s248
      %s251 = sshll.u32 [#allocation2], 4
      %s252 = int_to_ptr.vmem [resolvable:$true] %s251
      %254 = dma.vmem_to_hbm [thread:$0]  %s252, 128, %s4, [#allocation3]
    $region21: #{tpu_custom_call.1} parent=1 // pred_fallthru
      _
    // Predicated region
    $region22: #{tpu_custom_call.1} parent=1 // pred_check
      _
    $region23: #{tpu_custom_call.1} parent=1 // pred_check_branch
      %256 = sbr.rel (0) target = $region25
    $region24: #{tpu_custom_call.1} parent=1 // pred_region
      %257 = dma.done [#allocation3], 128
    $region25: #{tpu_custom_call.1} parent=1 // pred_fallthru
      _
    %258 = vsyncpa [#allocation3], 1

</llo_original>
